<compile_context>
chip_gen: v5e
topology: v5e:2x2
jax: 0.10.0
libtpu: 0.0.40
codegen_flags: <defaults>
</compile_context>

<pallas_src>
import functools

import jax
import jax.numpy as jnp
from jax.experimental import pallas as pl
from jax.experimental.pallas import tpu as pltpu

LN_EPS = 1e-5  # nn.LayerNorm default
LANE = 128     # vreg lane width on v5e/v6e/v7x


def _round_up(n, m):
    return (n + m - 1) // m * m


def _pad_cols(a, axis, new_size):
    pad = new_size - a.shape[axis]
    if pad == 0:
        return a
    widths = [(0, 0)] * a.ndim
    widths[axis] = (0, pad)
    return jnp.pad(a, widths)


def residual_block_kernel(x_ref, w1s_ref, b1_ref, w2_ref, b2s_ref, *rest,
                          hidden_pad: int, out_logical: int, use_layer_norm: bool):
    if use_layer_norm:
        gamma_ref, beta_ref, o_ref = rest
    else:
        (o_ref,) = rest

    w1s = w1s_ref[...]                               # [in, hidden_pad + out_pad] (bf16/f32)
    x = x_ref[...].astype(w1s.dtype)                 # [B, in] cast to MXU dtype

    # Fused first pass: x @ [W1 || Ws]  ->  [B, hidden_pad + out_pad], f32 accumulation.
    z = jnp.dot(x, w1s, preferred_element_type=jnp.float32)
    # hidden_pad is a multiple of 128, so both slices are lane-tile-aligned re-views.
    h = jnp.maximum(z[:, :hidden_pad] + b1_ref[...], 0.0)      # dense hidden (f32)
    skip = z[:, hidden_pad:]                                    # skip branch (f32)

    # Second pass: h @ W2, plus skip and the pre-added bias (b2 + bs).
    # Dropout == identity in eval mode.
    w2 = w2_ref[...]
    y = jnp.dot(h.astype(w2.dtype), w2, preferred_element_type=jnp.float32)
    y = y + skip + b2s_ref[...]                                 # [B, out_pad] f32

    if use_layer_norm:
        # Padded lanes of y are exactly zero (zero-padded Ws/W2 columns and biases),
        # so single-pass sums with 1/out_logical give exact statistics for the
        # logical lanes.  rsqrt goes to the EUP slot; no divides.
        inv_n = 1.0 / out_logical
        mean = jnp.sum(y, axis=-1, keepdims=True) * inv_n
        ex2 = jnp.sum(y * y, axis=-1, keepdims=True) * inv_n
        var = ex2 - mean * mean
        y = (y - mean) * jax.lax.rsqrt(var + LN_EPS)
        y = y * gamma_ref[...] + beta_ref[...]       # padded gamma/beta are zero

    o_ref[...] = y.astype(o_ref.dtype)


def prepare_params(p, *, weight_dtype=jnp.bfloat16):
    """One-time param transform (NOT per call):
      * zero-pad hidden and out feature dims to multiples of 128 (lane-dense),
      * concat W1||Ws along the output axis, pre-add b2+bs,
      * cast weights to the MXU dtype (bf16 by default; biases/LN params stay f32)."""
    in_n, hidden = p["w1"].shape
    out_n = p["w2"].shape[1]
    hid_p = _round_up(hidden, LANE)
    out_p = _round_up(out_n, LANE)

    w1 = _pad_cols(p["w1"], 1, hid_p)                             # [in, hid_p]
    ws = _pad_cols(p["ws"], 1, out_p)                             # [in, out_p]
    w2 = _pad_cols(_pad_cols(p["w2"], 0, hid_p), 1, out_p)        # [hid_p, out_p]

    return {
        "w1s": jnp.concatenate([w1, ws], axis=1).astype(weight_dtype),
        "b1": _pad_cols(p["b1"], 1, hid_p).astype(jnp.float32),
        "w2": w2.astype(weight_dtype),
        "b2s": _pad_cols(p["b2"] + p["bs"], 1, out_p).astype(jnp.float32),
        "gamma": _pad_cols(p["gamma"], 1, out_p).astype(jnp.float32),
        "beta": _pad_cols(p["beta"], 1, out_p).astype(jnp.float32),
        "hidden_pad": hid_p,
        "out_pad": out_p,
        "out_logical": out_n,
    }


def residual_block(x, prep, *, use_layer_norm: bool = True, tile_b=None,
                   single_buffer_weights: bool = False):
    """x: [B, in_neurons] (f32 or bf16). prep: output of prepare_params."""
    B, in_n = x.shape
    hid_p = prep["hidden_pad"]
    out_p = prep["out_pad"]
    out_n = prep["out_logical"]
    fused = prep["w1s"].shape[1]          # hid_p + out_p

    # Batch tile: multiple of 8 (sublane rule) or the whole batch.  Prefer >= 2 grid
    # steps so the "parallel" batch axis can shard across v7x's 2 TensorCores; cap at
    # 256 rows so double-buffered x/out tiles fit v5e's 16 MiB default scoped VMEM.
    if tile_b is None:
        if B % 8 == 0:
            tile_b = min(256, max(8, (B // 2) // 8 * 8))
        else:
            tile_b = B
    grid = (pl.cdiv(B, tile_b),)

    kernel = functools.partial(residual_block_kernel, hidden_pad=hid_p,
                               out_logical=out_n, use_layer_norm=use_layer_norm)

    resident = lambda i: (0, 0)           # weights/biases: same block every step
    # Constant-index blocks don't need double buffering; Buffered(1) halves their
    # VMEM footprint (useful on v7x's 64 MiB VMEM at large feature dims).
    res_kwargs = {"pipeline_mode": pl.Buffered(1)} if single_buffer_weights else {}

    def res_spec(shape):
        return pl.BlockSpec(shape, resident, **res_kwargs)

    in_specs = [
        pl.BlockSpec((tile_b, in_n), lambda i: (i, 0)),   # x: tiled over batch
        res_spec((in_n, fused)),                          # [W1 || Ws]
        res_spec((1, hid_p)),                             # b1
        res_spec((hid_p, out_p)),                         # W2
        res_spec((1, out_p)),                             # b2 + bs
    ]
    args = [x, prep["w1s"], prep["b1"], prep["w2"], prep["b2s"]]
    if use_layer_norm:
        in_specs += [res_spec((1, out_p)),                # gamma
                     res_spec((1, out_p))]                # beta
        args += [prep["gamma"], prep["beta"]]

    # Explicit VMEM budget: resident weights/biases (worst case 2x-buffered) plus
    # double-buffered x/out tiles, 2x safety margin, clamped to [16 MiB, 48 MiB]
    # so it stays under v7x's 64 MiB physical VMEM.
    w_bytes = prep["w1s"].dtype.itemsize
    x_bytes = x.dtype.itemsize
    est = ((in_n * fused + hid_p * out_p) * 2 * w_bytes
           + (hid_p + 3 * out_p) * 2 * 4
           + 2 * tile_b * (in_n * x_bytes + out_p * x_bytes))
    vmem_limit = int(min(max(2 * est + (4 << 20), 16 << 20), 48 << 20))

    out_padded = pl.pallas_call(
        kernel,
        out_shape=jax.ShapeDtypeStruct((B, out_p), x.dtype),
        grid=grid,
        in_specs=in_specs,
        out_specs=pl.BlockSpec((tile_b, out_p), lambda i: (i, 0)),
        compiler_params=pltpu.CompilerParams(
            dimension_semantics=("parallel",),
            vmem_limit_bytes=vmem_limit),
    )(*args)
    return out_padded[:, :out_n]          # drop padded lanes (lane-dense inside)


def init_params(key, in_neurons, hidden_neurons, out_neurons):
    """Deterministic synthetic init. Weights stored as [in, out] (PyTorch W^T)."""
    k1, k2, k3, k4, k5, k6 = jax.random.split(key, 6)
    s1 = 1.0 / jnp.sqrt(in_neurons)
    s2 = 1.0 / jnp.sqrt(hidden_neurons)
    return {
        "w1": jax.random.uniform(k1, (in_neurons, hidden_neurons), jnp.float32, -s1, s1),
        "b1": jax.random.uniform(k2, (1, hidden_neurons), jnp.float32, -s1, s1),
        "w2": jax.random.uniform(k3, (hidden_neurons, out_neurons), jnp.float32, -s2, s2),
        "b2": jax.random.uniform(k4, (1, out_neurons), jnp.float32, -s2, s2),
        "ws": jax.random.uniform(k5, (in_neurons, out_neurons), jnp.float32, -s1, s1),
        "bs": jax.random.uniform(k6, (1, out_neurons), jnp.float32, -s1, s1),
        "gamma": jnp.ones((1, out_neurons), jnp.float32),   # LayerNorm weight
        "beta": jnp.zeros((1, out_neurons), jnp.float32),   # LayerNorm bias
    }


def residual_block_ref(x, p, *, use_layer_norm=True):
    h = jnp.maximum(x @ p["w1"] + p["b1"], 0.0)
    y = (h @ p["w2"] + p["b2"]) + (x @ p["ws"] + p["bs"])
    if use_layer_norm:
        mean = jnp.mean(y, axis=-1, keepdims=True)
        var = jnp.mean(jnp.square(y - mean), axis=-1, keepdims=True)
        y = (y - mean) * jax.lax.rsqrt(var + LN_EPS) * p["gamma"] + p["beta"]
    return y


if __name__ == "__main__":
    in_neurons, hidden_neurons, out_neurons = 16, 32, 16
    batch = 16

    key = jax.random.PRNGKey(0)
    kx, kp = jax.random.split(key)
    x = jax.random.normal(kx, (batch, in_neurons), jnp.float32)
    params = init_params(kp, in_neurons, hidden_neurons, out_neurons)

    # --- f32-weight path: tight check against the pure-JAX reference -------------
    prep_f32 = prepare_params(params, weight_dtype=jnp.float32)
    ref = residual_block_ref(x, params, use_layer_norm=True)

    out = jax.block_until_ready(residual_block(x, prep_f32, use_layer_norm=True))
    assert out.shape == (batch, out_neurons)
    assert jnp.allclose(out, ref, atol=1e-5, rtol=1e-5), "mismatch vs reference (LN, f32)"

    # Multi-step batch grid (tile_b=8 -> grid of 2, megacore-shardable) must match.
    out_g = jax.block_until_ready(residual_block(x, prep_f32, use_layer_norm=True, tile_b=8))
    assert jnp.allclose(out_g, ref, atol=1e-5, rtol=1e-5), "mismatch vs reference (grid)"

    # No-LayerNorm path (gamma/beta not passed / not DMA'd).
    ref_nl = residual_block_ref(x, params, use_layer_norm=False)
    out_nl = jax.block_until_ready(residual_block(x, prep_f32, use_layer_norm=False))
    assert jnp.allclose(out_nl, ref_nl, atol=1e-5, rtol=1e-5), "mismatch vs reference (no LN)"

    # --- default bf16 MXU path: looser tolerance (bf16 mantissa ~8 bits) ----------
    prep_bf16 = prepare_params(params)                 # weight_dtype=bf16 default
    out_bf = jax.block_until_ready(residual_block(x, prep_bf16, use_layer_norm=True))
    assert jnp.allclose(out_bf, ref, atol=5e-2, rtol=5e-2), "mismatch vs reference (bf16)"

    print("KERNEL_OK")
</pallas_src>

<mosaic_0001>
module attributes {stable_mosaic.version = 11 : i64} {
  func.func @residual_block_kernel(%arg0: i32, %arg1: memref<8x16xf32, #tpu.memory_space<vmem>>, %arg2: memref<16x256xf32, #tpu.memory_space<vmem>>, %arg3: memref<1x128xf32, #tpu.memory_space<vmem>>, %arg4: memref<128x128xf32, #tpu.memory_space<vmem>>, %arg5: memref<1x128xf32, #tpu.memory_space<vmem>>, %arg6: memref<1x128xf32, #tpu.memory_space<vmem>>, %arg7: memref<1x128xf32, #tpu.memory_space<vmem>>, %arg8: memref<8x128xf32, #tpu.memory_space<vmem>>) attributes {dimension_semantics = [#tpu.dimension_semantics<parallel>], iteration_bounds = array<i64: 2>, scalar_prefetch = 0 : i64, scratch_operands = 0 : i64, tpu.core_type = #tpu.core_type<tc>, window_params = [{transform_indices = @transform_0, window_bounds = array<i64: 8, 16>}, {pipeline_mode = #tpu.pipeline_mode<synchronous>, transform_indices = @transform_1, window_bounds = array<i64: 16, 256>}, {pipeline_mode = #tpu.pipeline_mode<synchronous>, transform_indices = @transform_2, window_bounds = array<i64: 1, 128>}, {pipeline_mode = #tpu.pipeline_mode<synchronous>, transform_indices = @transform_3, window_bounds = array<i64: 128, 128>}, {pipeline_mode = #tpu.pipeline_mode<synchronous>, transform_indices = @transform_4, window_bounds = array<i64: 1, 128>}, {pipeline_mode = #tpu.pipeline_mode<synchronous>, transform_indices = @transform_5, window_bounds = array<i64: 1, 128>}, {pipeline_mode = #tpu.pipeline_mode<synchronous>, transform_indices = @transform_6, window_bounds = array<i64: 1, 128>}, {transform_indices = @transform_7, window_bounds = array<i64: 8, 128>}]} {
    %c0 = arith.constant 0 : index
    %c0_0 = arith.constant 0 : index
    %0 = vector.load %arg2[%c0, %c0_0] : memref<16x256xf32, #tpu.memory_space<vmem>>, vector<16x256xf32>
    %c0_1 = arith.constant 0 : index
    %c0_2 = arith.constant 0 : index
    %1 = vector.load %arg1[%c0_1, %c0_2] : memref<8x16xf32, #tpu.memory_space<vmem>>, vector<8x16xf32>
    %cst = arith.constant dense<0.000000e+00> : vector<8x256xf32>
    %2 = tpu.matmul %1, %0, %cst {dimension_numbers = #tpu.dot_dimension_numbers<[1], [0], [0], [1], [0, 0, 1, 1], [], []>} : vector<8x16xf32>, vector<16x256xf32>, vector<8x256xf32> -> vector<8x256xf32>
    %3 = vector.extract_strided_slice %2 {offsets = [0, 0], sizes = [8, 128], strides = [1, 1]} : vector<8x256xf32> to vector<8x128xf32>
    %c0_3 = arith.constant 0 : index
    %c0_4 = arith.constant 0 : index
    %4 = vector.load %arg3[%c0_3, %c0_4] : memref<1x128xf32, #tpu.memory_space<vmem>>, vector<1x128xf32>
    %5 = vector.broadcast %4 : vector<1x128xf32> to vector<8x128xf32>
    %6 = arith.addf %3, %5 : vector<8x128xf32>
    %cst_5 = arith.constant 0.000000e+00 : f32
    %7 = vector.broadcast %cst_5 : f32 to vector<8x128xf32>
    %8 = arith.maximumf %6, %7 : vector<8x128xf32>
    %9 = vector.extract_strided_slice %2 {offsets = [0, 128], sizes = [8, 128], strides = [1, 1]} : vector<8x256xf32> to vector<8x128xf32>
    %c0_6 = arith.constant 0 : index
    %c0_7 = arith.constant 0 : index
    %10 = vector.load %arg4[%c0_6, %c0_7] : memref<128x128xf32, #tpu.memory_space<vmem>>, vector<128x128xf32>
    %cst_8 = arith.constant dense<0.000000e+00> : vector<8x128xf32>
    %11 = tpu.matmul %8, %10, %cst_8 {dimension_numbers = #tpu.dot_dimension_numbers<[1], [0], [0], [1], [0, 0, 1, 1], [], []>} : vector<8x128xf32>, vector<128x128xf32>, vector<8x128xf32> -> vector<8x128xf32>
    %12 = arith.addf %11, %9 : vector<8x128xf32>
    %c0_9 = arith.constant 0 : index
    %c0_10 = arith.constant 0 : index
    %13 = vector.load %arg5[%c0_9, %c0_10] : memref<1x128xf32, #tpu.memory_space<vmem>>, vector<1x128xf32>
    %14 = vector.broadcast %13 : vector<1x128xf32> to vector<8x128xf32>
    %15 = arith.addf %12, %14 : vector<8x128xf32>
    %cst_11 = arith.constant dense<0.000000e+00> : vector<8xf32>
    %16 = vector.multi_reduction <add>, %15, %cst_11 [1] : vector<8x128xf32> to vector<8xf32>
    %17 = vector.shape_cast %16 : vector<8xf32> to vector<8x1xf32>
    %cst_12 = arith.constant 6.250000e-02 : f32
    %18 = vector.broadcast %cst_12 : f32 to vector<8x1xf32>
    %19 = arith.mulf %17, %18 : vector<8x1xf32>
    %20 = arith.mulf %15, %15 : vector<8x128xf32>
    %cst_13 = arith.constant dense<0.000000e+00> : vector<8xf32>
    %21 = vector.multi_reduction <add>, %20, %cst_13 [1] : vector<8x128xf32> to vector<8xf32>
    %22 = vector.shape_cast %21 : vector<8xf32> to vector<8x1xf32>
    %cst_14 = arith.constant 6.250000e-02 : f32
    %23 = vector.broadcast %cst_14 : f32 to vector<8x1xf32>
    %24 = arith.mulf %22, %23 : vector<8x1xf32>
    %25 = arith.mulf %19, %19 : vector<8x1xf32>
    %26 = arith.subf %24, %25 : vector<8x1xf32>
    %27 = vector.broadcast %19 : vector<8x1xf32> to vector<8x128xf32>
    %28 = arith.subf %15, %27 : vector<8x128xf32>
    %cst_15 = arith.constant 9.99999974E-6 : f32
    %29 = vector.broadcast %cst_15 : f32 to vector<8x1xf32>
    %30 = arith.addf %26, %29 : vector<8x1xf32>
    %31 = math.rsqrt %30 : vector<8x1xf32>
    %32 = vector.broadcast %31 : vector<8x1xf32> to vector<8x128xf32>
    %33 = arith.mulf %28, %32 : vector<8x128xf32>
    %c0_16 = arith.constant 0 : index
    %c0_17 = arith.constant 0 : index
    %34 = vector.load %arg6[%c0_16, %c0_17] : memref<1x128xf32, #tpu.memory_space<vmem>>, vector<1x128xf32>
    %35 = vector.broadcast %34 : vector<1x128xf32> to vector<8x128xf32>
    %36 = arith.mulf %33, %35 : vector<8x128xf32>
    %c0_18 = arith.constant 0 : index
    %c0_19 = arith.constant 0 : index
    %37 = vector.load %arg7[%c0_18, %c0_19] : memref<1x128xf32, #tpu.memory_space<vmem>>, vector<1x128xf32>
    %38 = vector.broadcast %37 : vector<1x128xf32> to vector<8x128xf32>
    %39 = arith.addf %36, %38 : vector<8x128xf32>
    %c0_20 = arith.constant 0 : index
    %c0_21 = arith.constant 0 : index
    %40 = vector.load %arg8[%c0_20, %c0_21] : memref<8x128xf32, #tpu.memory_space<vmem>>, vector<8x128xf32>
    tpu.vector_store %arg8[%c0_20, %c0_21], %39 {strides = array<i32>} : memref<8x128xf32, #tpu.memory_space<vmem>>, vector<8x128xf32>,
    return
  }
  func.func @transform_0(%arg0: i32) -> (i32, i32) {
    %c0_i32 = arith.constant 0 : i32
    %c0_i32_0 = arith.constant 0 : i32
    return %arg0, %c0_i32 : i32, i32
  }
  func.func @transform_1(%arg0: i32) -> (i32, i32) {
    %c0_i32 = arith.constant 0 : i32
    %c0_i32_0 = arith.constant 0 : i32
    %c0_i32_1 = arith.constant 0 : i32
    return %c0_i32, %c0_i32_0 : i32, i32
  }
  func.func @transform_2(%arg0: i32) -> (i32, i32) {
    %c0_i32 = arith.constant 0 : i32
    %c0_i32_0 = arith.constant 0 : i32
    %c0_i32_1 = arith.constant 0 : i32
    return %c0_i32, %c0_i32_0 : i32, i32
  }
  func.func @transform_3(%arg0: i32) -> (i32, i32) {
    %c0_i32 = arith.constant 0 : i32
    %c0_i32_0 = arith.constant 0 : i32
    %c0_i32_1 = arith.constant 0 : i32
    return %c0_i32, %c0_i32_0 : i32, i32
  }
  func.func @transform_4(%arg0: i32) -> (i32, i32) {
    %c0_i32 = arith.constant 0 : i32
    %c0_i32_0 = arith.constant 0 : i32
    %c0_i32_1 = arith.constant 0 : i32
    return %c0_i32, %c0_i32_0 : i32, i32
  }
  func.func @transform_5(%arg0: i32) -> (i32, i32) {
    %c0_i32 = arith.constant 0 : i32
    %c0_i32_0 = arith.constant 0 : i32
    %c0_i32_1 = arith.constant 0 : i32
    return %c0_i32, %c0_i32_0 : i32, i32
  }
  func.func @transform_6(%arg0: i32) -> (i32, i32) {
    %c0_i32 = arith.constant 0 : i32
    %c0_i32_0 = arith.constant 0 : i32
    %c0_i32_1 = arith.constant 0 : i32
    return %c0_i32, %c0_i32_0 : i32, i32
  }
  func.func @transform_7(%arg0: i32) -> (i32, i32) {
    %c0_i32 = arith.constant 0 : i32
    %c0_i32_0 = arith.constant 0 : i32
    return %arg0, %c0_i32 : i32, i32
  }
}

</mosaic_0001>

<llo_original>
// kernel: tpu_custom_call.1
$region0: #{tpu_custom_call.1}
  #allocation0 [shape = 'u32[]', space=smem, size = 0x4, offset = 0x4, fixed_abs, tag = 'smem constant byte address 0x4 - core index']
  #allocation1 [shape = 'u32[72,128]{1,0:T(1,128)}', space=vmem, size = 0x9000, scoped, tag = 'internal scratch']
  %s0 = inlined_call_operand.hbm [shape: f32[16,16], index: 0, kind: input, shape index: {}]
  %s1 = inlined_call_operand.hbm [shape: f32[16,256], index: 1, kind: input, shape index: {}]
  %s2 = inlined_call_operand.vmem [shape: f32[1,128], index: 2, kind: input, shape index: {}]
  %s3 = inlined_call_operand.hbm [shape: f32[128,128], index: 3, kind: input, shape index: {}]
  %s4 = inlined_call_operand.vmem [shape: f32[1,128], index: 4, kind: input, shape index: {}]
  %s5 = inlined_call_operand.vmem [shape: f32[1,128], index: 5, kind: input, shape index: {}]
  %s6 = inlined_call_operand.vmem [shape: f32[1,128], index: 6, kind: input, shape index: {}]
  %s7 = inlined_call_operand.hbm [shape: f32[16,128], index: 7, kind: output, shape index: {}]
  %s8 = sld [smem:[#allocation0]]
  $region73: #{tpu_custom_call.1} parent=0
    _
  %s10 = ssub.s32 1, %s8
  %s11 = scalar_select 0, %s10, %s8
  $region1: #{tpu_custom_call.1} parent=0
    #allocation2 [shape = 'u8[8192]{0}', space=vmem, size = 0x2000, scoped, tag = 'input window, operand 0']
    #allocation3 [shape = 's32[2]{0}', space=sflag, size = 0x8, scoped, tag = 'scoped memory for tpu_custom_call.1']
    #allocation4 [shape = 's32[2]{0}', space=sflag, size = 0x8, scoped, tag = 'scoped memory for tpu_custom_call.1']
    #allocation5 [shape = 'u8[16384]{0}', space=vmem, size = 0x4000, scoped, tag = 'input window, operand 1, single buffered']
    #allocation6 [shape = 's32[1]{0}', space=sflag, size = 0x4, scoped, tag = 'scoped memory for tpu_custom_call.1']
    #allocation7 [shape = 'u8[65536]{0}', space=vmem, size = 0x10000, scoped, tag = 'input window, operand 3, single buffered']
    #allocation8 [shape = 'u8[8192]{0}', space=vmem, size = 0x2000, scoped, tag = 'output window, operand 0']
    %12 = vsyncpa [#allocation3], 0
    %s13 = scalar_lea.sflag [#allocation3], 1
    %14 = vsyncpa %s13, 0
    %15 = vsyncpa [#allocation6], 0
    %16 = vsyncpa [#allocation4], 0
    %s17 = scalar_lea.sflag [#allocation4], 1
    %18 = vsyncpa %s17, 0
    loop: start=0, step=1, limit=4
    $region2: #{tpu_custom_call.1} parent=1 // loop_pre_header
      _
    $region3: #{tpu_custom_call.1} parent=1 // loop_header
      %s20 = sphi 0, %s24
      %p21 = scmp.ge.s32.totalorder %s20, 4
      %s30 = sphi 0, %s32
      %s33 = sphi 0, %s30
      %s34 = sphi 0, %s33
      %s50 = sphi 0, %s34
      %s54 = sphi 0, %s54
      %s56 = sphi 0, %s54
      %s57 = sphi 0, %s56
      %s71 = sphi 0, %s57
      %s75 = sphi 0, %s75
      %s77 = sphi 0, %s75
      %s78 = sphi 0, %s77
      %s92 = sphi 0, %s78
      %s96 = sphi 0, %s96
      %s98 = sphi 0, %s96
      %s99 = sphi 0, %s98
      %s113 = sphi 0, %s99
      %s117 = sphi 0, %s117
      %s119 = sphi 0, %s117
      %s120 = sphi 0, %s119
      %s134 = sphi 0, %s120
      %s138 = sphi 0, %s138
      %s140 = sphi 0, %s138
      %s141 = sphi 0, %s140
      %s155 = sphi 0, %s141
      %s159 = sphi 0, %s159
      %s161 = sphi 0, %s159
      %s162 = sphi 0, %s161
      %s176 = sphi 0, %s162
      %s182 = sphi 0, %s184
      %s185 = sphi 0, %s182
      %s186 = sphi 0, %s185
      %s202 = sphi 0, %s186
    $region4: #{tpu_custom_call.1} parent=1 // loop_header_branch
      %23 = sbr.rel (%p21) target = $region8
    $region5: #{tpu_custom_call.1} parent=1 // loop_body
      %s25 = ssub.s32 %s20, 1
      %s26 = ssub.s32 %s20, 2
      %s27 = sadd.s32 %s20, 1
      %s28 = ssub.s32 %s20, %s27
      %p29 = scmp.eq.s32.totalorder %s28, 0
      %s31 = sadd.s32 %s30, 1
      %s32 = scalar_select %p29, %s30, %s31
      %p35 = pneg %p29
      %p36 = scmp.eq.s32.totalorder %s20, 1
      %p37 = por %p35, %p36
      %p38 = scmp.ne.s32.totalorder %s30, %s33
      %p39 = scmp.eq.s32.totalorder %s20, 0
      %p40 = por %p38, %p39
      %p41 = scmp.ne.s32.totalorder %s30, %s33
      %p42 = scmp.eq.s32.totalorder %s25, 1
      %p43 = por %p41, %p42
      %p44 = scmp.ne.s32.totalorder %s33, %s34
      %p45 = scmp.eq.s32.totalorder %s25, 0
      %p46 = por %p44, %p45
      %p47 = scmp.ne.s32.totalorder %s33, %s34
      %p48 = scmp.eq.s32.totalorder %s26, 1
      %p49 = por %p47, %p48
      %p51 = scmp.ne.s32.totalorder %s34, %s50
      %p52 = scmp.eq.s32.totalorder %s26, 0
      %p53 = por %p51, %p52
      %s55 = sadd.s32 %s54, 1
      %p58 = scmp.eq.s32.totalorder %s20, 1
      %p59 = scmp.ne.s32.totalorder %s54, %s56
      %p60 = scmp.eq.s32.totalorder %s20, 0
      %p61 = por %p59, %p60
      %p62 = scmp.ne.s32.totalorder %s54, %s56
      %p63 = scmp.eq.s32.totalorder %s25, 1
      %p64 = por %p62, %p63
      %p65 = scmp.ne.s32.totalorder %s56, %s57
      %p66 = scmp.eq.s32.totalorder %s25, 0
      %p67 = por %p65, %p66
      %p68 = scmp.ne.s32.totalorder %s56, %s57
      %p69 = scmp.eq.s32.totalorder %s26, 1
      %p70 = por %p68, %p69
      %p72 = scmp.ne.s32.totalorder %s57, %s71
      %p73 = scmp.eq.s32.totalorder %s26, 0
      %p74 = por %p72, %p73
      %s76 = sadd.s32 %s75, 1
      %p79 = scmp.eq.s32.totalorder %s20, 1
      %p80 = scmp.ne.s32.totalorder %s75, %s77
      %p81 = scmp.eq.s32.totalorder %s20, 0
      %p82 = por %p80, %p81
      %p83 = scmp.ne.s32.totalorder %s75, %s77
      %p84 = scmp.eq.s32.totalorder %s25, 1
      %p85 = por %p83, %p84
      %p86 = scmp.ne.s32.totalorder %s77, %s78
      %p87 = scmp.eq.s32.totalorder %s25, 0
      %p88 = por %p86, %p87
      %p89 = scmp.ne.s32.totalorder %s77, %s78
      %p90 = scmp.eq.s32.totalorder %s26, 1
      %p91 = por %p89, %p90
      %p93 = scmp.ne.s32.totalorder %s78, %s92
      %p94 = scmp.eq.s32.totalorder %s26, 0
      %p95 = por %p93, %p94
      %s97 = sadd.s32 %s96, 1
      %p100 = scmp.eq.s32.totalorder %s20, 1
      %p101 = scmp.ne.s32.totalorder %s96, %s98
      %p102 = scmp.eq.s32.totalorder %s20, 0
      %p103 = por %p101, %p102
      %p104 = scmp.ne.s32.totalorder %s96, %s98
      %p105 = scmp.eq.s32.totalorder %s25, 1
      %p106 = por %p104, %p105
      %p107 = scmp.ne.s32.totalorder %s98, %s99
      %p108 = scmp.eq.s32.totalorder %s25, 0
      %p109 = por %p107, %p108
      %p110 = scmp.ne.s32.totalorder %s98, %s99
      %p111 = scmp.eq.s32.totalorder %s26, 1
      %p112 = por %p110, %p111
      %p114 = scmp.ne.s32.totalorder %s99, %s113
      %p115 = scmp.eq.s32.totalorder %s26, 0
      %p116 = por %p114, %p115
      %s118 = sadd.s32 %s117, 1
      %p121 = scmp.eq.s32.totalorder %s20, 1
      %p122 = scmp.ne.s32.totalorder %s117, %s119
      %p123 = scmp.eq.s32.totalorder %s20, 0
      %p124 = por %p122, %p123
      %p125 = scmp.ne.s32.totalorder %s117, %s119
      %p126 = scmp.eq.s32.totalorder %s25, 1
      %p127 = por %p125, %p126
      %p128 = scmp.ne.s32.totalorder %s119, %s120
      %p129 = scmp.eq.s32.totalorder %s25, 0
      %p130 = por %p128, %p129
      %p131 = scmp.ne.s32.totalorder %s119, %s120
      %p132 = scmp.eq.s32.totalorder %s26, 1
      %p133 = por %p131, %p132
      %p135 = scmp.ne.s32.totalorder %s120, %s134
      %p136 = scmp.eq.s32.totalorder %s26, 0
      %p137 = por %p135, %p136
      %s139 = sadd.s32 %s138, 1
      %p142 = scmp.eq.s32.totalorder %s20, 1
      %p143 = scmp.ne.s32.totalorder %s138, %s140
      %p144 = scmp.eq.s32.totalorder %s20, 0
      %p145 = por %p143, %p144
      %p146 = scmp.ne.s32.totalorder %s138, %s140
      %p147 = scmp.eq.s32.totalorder %s25, 1
      %p148 = por %p146, %p147
      %p149 = scmp.ne.s32.totalorder %s140, %s141
      %p150 = scmp.eq.s32.totalorder %s25, 0
      %p151 = por %p149, %p150
      %p152 = scmp.ne.s32.totalorder %s140, %s141
      %p153 = scmp.eq.s32.totalorder %s26, 1
      %p154 = por %p152, %p153
      %p156 = scmp.ne.s32.totalorder %s141, %s155
      %p157 = scmp.eq.s32.totalorder %s26, 0
      %p158 = por %p156, %p157
      %s160 = sadd.s32 %s159, 1
      %p163 = scmp.eq.s32.totalorder %s20, 1
      %p164 = scmp.ne.s32.totalorder %s159, %s161
      %p165 = scmp.eq.s32.totalorder %s20, 0
      %p166 = por %p164, %p165
      %p167 = scmp.ne.s32.totalorder %s159, %s161
      %p168 = scmp.eq.s32.totalorder %s25, 1
      %p169 = por %p167, %p168
      %p170 = scmp.ne.s32.totalorder %s161, %s162
      %p171 = scmp.eq.s32.totalorder %s25, 0
      %p172 = por %p170, %p171
      %p173 = scmp.ne.s32.totalorder %s161, %s162
      %p174 = scmp.eq.s32.totalorder %s26, 1
      %p175 = por %p173, %p174
      %p177 = scmp.ne.s32.totalorder %s162, %s176
      %p178 = scmp.eq.s32.totalorder %s26, 0
      %p179 = por %p177, %p178
      %s180 = ssub.s32 %s20, %s27
      %p181 = scmp.eq.s32.totalorder %s180, 0
      %s183 = sadd.s32 %s182, 1
      %s184 = scalar_select %p181, %s182, %s183
      %p187 = pneg %p181
      %p188 = scmp.eq.s32.totalorder %s20, 1
      %p189 = por %p187, %p188
      %p190 = scmp.ne.s32.totalorder %s182, %s185
      %p191 = scmp.eq.s32.totalorder %s20, 0
      %p192 = por %p190, %p191
      %p193 = scmp.ne.s32.totalorder %s182, %s185
      %p194 = scmp.eq.s32.totalorder %s25, 1
      %p195 = por %p193, %p194
      %p196 = scmp.ne.s32.totalorder %s185, %s186
      %p197 = scmp.eq.s32.totalorder %s25, 0
      %p198 = por %p196, %p197
      %p199 = scmp.ne.s32.totalorder %s185, %s186
      %p200 = scmp.eq.s32.totalorder %s26, 1
      %p201 = por %p199, %p200
      %p203 = scmp.ne.s32.totalorder %s186, %s202
      %p204 = scmp.eq.s32.totalorder %s26, 0
      %p205 = por %p203, %p204
      %p206 = scmp.le.s32.totalorder 1, %s20
      %p207 = scmp.lt.s32.totalorder %s20, 3
      %p208 = pnand %p206, %p207
      %p209 = pneg %p208
      // Predicated region
      $region9: #{tpu_custom_call.1} parent=5 // pred_check
        _
      $region10: #{tpu_custom_call.1} parent=5 // pred_check_branch
        %211 = sbr.rel (%p208) target = $region12
      $region11: #{tpu_custom_call.1} parent=5 // pred_region
        %s212 = ssub.s32 %s20, 1
        // Predicated region
        $region13: #{tpu_custom_call.1} parent=11 // pred_check
          %p213 = pneg %p67
        $region14: #{tpu_custom_call.1} parent=11 // pred_check_branch
          %215 = sbr.rel (%p213) target = $region16
        $region15: #{tpu_custom_call.1} parent=11 // pred_region
          %217 = vsyncadd [#allocation6], 0
          %s218 = sshll.u32 %s1, 4
          %s219 = int_to_ptr.hbm [resolvable:$true] %s218
          %s220 = sshll.u32 [#allocation5], 4
          %s221 = int_to_ptr.vmem [resolvable:$true] %s220
          %226 = dma.hbm_to_vmem [thread:$0]  %s219, 512, %s221, [#allocation6], 256, 256, 16
        $region16: #{tpu_custom_call.1} parent=11 // pred_fallthru
          _
        // Predicated region
        $region17: #{tpu_custom_call.1} parent=11 // pred_check
          %p227 = pneg %p88
        $region18: #{tpu_custom_call.1} parent=11 // pred_check_branch
          %229 = sbr.rel (%p227) target = $region20
        $region19: #{tpu_custom_call.1} parent=11 // pred_region
          _
        $region20: #{tpu_custom_call.1} parent=11 // pred_fallthru
          _
        // Predicated region
        $region21: #{tpu_custom_call.1} parent=11 // pred_check
          %p230 = pneg %p109
        $region22: #{tpu_custom_call.1} parent=11 // pred_check_branch
          %232 = sbr.rel (%p230) target = $region24
        $region23: #{tpu_custom_call.1} parent=11 // pred_region
          %234 = vsyncadd [#allocation6], 0
          %s235 = sshll.u32 %s3, 4
          %s236 = int_to_ptr.hbm [resolvable:$true] %s235
          %s237 = sshll.u32 [#allocation7], 4
          %s238 = int_to_ptr.vmem [resolvable:$true] %s237
          %243 = dma.hbm_to_vmem [thread:$0]  %s236, 2048, %s238, [#allocation6], 128, 128, 8
        $region24: #{tpu_custom_call.1} parent=11 // pred_fallthru
          _
        // Predicated region
        $region25: #{tpu_custom_call.1} parent=11 // pred_check
          %p244 = pneg %p130
        $region26: #{tpu_custom_call.1} parent=11 // pred_check_branch
          %246 = sbr.rel (%p244) target = $region28
        $region27: #{tpu_custom_call.1} parent=11 // pred_region
          _
        $region28: #{tpu_custom_call.1} parent=11 // pred_fallthru
          _
        // Predicated region
        $region29: #{tpu_custom_call.1} parent=11 // pred_check
          %p247 = pneg %p151
        $region30: #{tpu_custom_call.1} parent=11 // pred_check_branch
          %249 = sbr.rel (%p247) target = $region32
        $region31: #{tpu_custom_call.1} parent=11 // pred_region
          _
        $region32: #{tpu_custom_call.1} parent=11 // pred_fallthru
          _
        // Predicated region
        $region33: #{tpu_custom_call.1} parent=11 // pred_check
          %p250 = pneg %p172
        $region34: #{tpu_custom_call.1} parent=11 // pred_check_branch
          %252 = sbr.rel (%p250) target = $region36
        $region35: #{tpu_custom_call.1} parent=11 // pred_region
          _
        $region36: #{tpu_custom_call.1} parent=11 // pred_fallthru
          _
      $region12: #{tpu_custom_call.1} parent=5 // pred_fallthru
        _
      %p253 = scmp.lt.s32.totalorder %s20, 2
      // Predicated region
      $region37: #{tpu_custom_call.1} parent=5 // pred_check
        %p254 = pneg %p253
      $region38: #{tpu_custom_call.1} parent=5 // pred_check_branch
        %256 = sbr.rel (%p254) target = $region40
      $region39: #{tpu_custom_call.1} parent=5 // pred_region
        // Predicated region
        $region41: #{tpu_custom_call.1} parent=39 // pred_check
          %p257 = pneg %p40
        $region42: #{tpu_custom_call.1} parent=39 // pred_check_branch
          %259 = sbr.rel (%p257) target = $region44
        $region43: #{tpu_custom_call.1} parent=39 // pred_region
          %s260 = sand.u32 %s30, 1
          %s261 = scalar_lea.sflag [#allocation3], %s260
          %s262 = sand.u32 %s30, 1
          %s263 = smul.addr %s262, 8
          %s264 = scalar_lea.vmem [#allocation2], %s263
          %266 = vsyncadd %s261, 0
          %s267 = smul.addr %s20, 8
          %s268 = scalar_lea.hbm %s0, %s267
          %s270 = sshll.u32 %s268, 4
          %s271 = int_to_ptr.hbm [resolvable:$true] %s270
          %s272 = sshll.u32 %s264, 4
          %s273 = int_to_ptr.vmem [resolvable:$true] %s272
          %275 = dma.hbm_to_vmem [thread:$0]  %s271, 128, %s273, %s261
        $region44: #{tpu_custom_call.1} parent=39 // pred_fallthru
          _
      $region40: #{tpu_custom_call.1} parent=5 // pred_fallthru
        _
      %p276 = scmp.le.s32.totalorder 1, %s20
      %p277 = scmp.lt.s32.totalorder %s20, 3
      %p278 = pnand %p276, %p277
      %p279 = pneg %p278
      // Predicated region
      $region45: #{tpu_custom_call.1} parent=5 // pred_check
        _
      $region46: #{tpu_custom_call.1} parent=5 // pred_check_branch
        %281 = sbr.rel (%p278) target = $region48
      $region47: #{tpu_custom_call.1} parent=5 // pred_region
        %s282 = ssub.s32 %s20, 1
        %s283 = sand.u32 %s33, 1
        %s284 = scalar_lea.sflag [#allocation3], %s283
        %s285 = sand.u32 %s33, 1
        %s286 = smul.addr %s285, 8
        %s287 = scalar_lea.vmem [#allocation2], %s286
        // Predicated region
        $region49: #{tpu_custom_call.1} parent=47 // pred_check
          %p288 = pneg %p46
        $region50: #{tpu_custom_call.1} parent=47 // pred_check_branch
          %290 = sbr.rel (%p288) target = $region52
        $region51: #{tpu_custom_call.1} parent=47 // pred_region
          %292 = dma.done %s284, 128
        $region52: #{tpu_custom_call.1} parent=47 // pred_fallthru
          _
        // Predicated region
        $region53: #{tpu_custom_call.1} parent=47 // pred_check
          %p293 = pneg %p67
        $region54: #{tpu_custom_call.1} parent=47 // pred_check_branch
          %295 = sbr.rel (%p293) target = $region56
        $region55: #{tpu_custom_call.1} parent=47 // pred_region
          %297 = dma.done [#allocation6], 512
        $region56: #{tpu_custom_call.1} parent=47 // pred_fallthru
          _
        // Predicated region
        $region57: #{tpu_custom_call.1} parent=47 // pred_check
          %p298 = pneg %p109
        $region58: #{tpu_custom_call.1} parent=47 // pred_check_branch
          %300 = sbr.rel (%p298) target = $region60
        $region59: #{tpu_custom_call.1} parent=47 // pred_region
          %302 = dma.done [#allocation6], 2048
        $region60: #{tpu_custom_call.1} parent=47 // pred_fallthru
          _
        %s303 = sand.u32 %s33, 1
        %s304 = scalar_lea.sflag [#allocation3], %s303
        %s305 = sand.u32 %s33, 1
        %s306 = smul.addr %s305, 8
        %s307 = scalar_lea.vmem [#allocation2], %s306
        %p308 = pneg %p46
        %p309 = pneg %p43
        %p310 = pneg %p67
        %p311 = pneg %p64
        %p312 = pneg %p88
        %p313 = pneg %p85
        %p314 = pneg %p109
        %p315 = pneg %p106
        %p316 = pneg %p130
        %p317 = pneg %p127
        %p318 = pneg %p151
        %p319 = pneg %p148
        %p320 = pneg %p172
        %p321 = pneg %p169
        %p322 = pneg %p198
        %p323 = pneg %p195
        %s324 = sand.u32 %s185, 1
        %s325 = scalar_lea.sflag [#allocation4], %s324
        %s326 = sand.u32 %s185, 1
        %s327 = smul.addr %s326, 8
        %s328 = scalar_lea.vmem [#allocation8], %s327
        %v329 = vld [vmem:[#allocation5] sm:$0xff]
        %v330 = vld [vmem:[#allocation5 + $0x8] sm:$0xff]
        %v331 = vld [vmem:[#allocation5 + $0x10] sm:$0xff]
        %v332 = vld [vmem:[#allocation5 + $0x18] sm:$0xff]
        %v333 = vld [vmem:[%s287] sm:$0xff]
        %vm334 = vcmask 130048
        %v336 = vsel %vm334, %v333, 0
        %338 = vmatpush.msra.mxu0 0.0
        %339 = vmatpush.msra.mxu0 0.0
        %340 = vmatpush.msra.mxu0 0.0
        %341 = vmatpush.msra.mxu0 0.0
        %342 = vmatpush.msra.mxu0 0.0
        %343 = vmatpush.msra.mxu0 0.0
        %344 = vmatpush.msra.mxu0 0.0
        %345 = vmatpush.msra.mxu0 0.0
        %346 = vmatpush.msra.mxu0 0.0
        %347 = vmatpush.msra.mxu0 0.0
        %348 = vmatpush.msra.mxu0 0.0
        %349 = vmatpush.msra.mxu0 0.0
        %350 = vmatpush.msra.mxu0 0.0
        %351 = vmatpush.msra.mxu0 0.0
        %352 = vmatpush.msra.mxu0 %v331
        %353 = vmatpush.msra.mxu0 %v329
        %354 = vmatmul.f32.gmra.mxu0 %v336
        %v355 = vpop.f32.mrf.mxu0
        %v356 = vadd.f32 0.0, %v355
        %357 = vdwg.mxu0
        %358 = vmatpush.msra.mxu0 0.0
        %359 = vmatpush.msra.mxu0 0.0
        %360 = vmatpush.msra.mxu0 0.0
        %361 = vmatpush.msra.mxu0 0.0
        %362 = vmatpush.msra.mxu0 0.0
        %363 = vmatpush.msra.mxu0 0.0
        %364 = vmatpush.msra.mxu0 0.0
        %365 = vmatpush.msra.mxu0 0.0
        %366 = vmatpush.msra.mxu0 0.0
        %367 = vmatpush.msra.mxu0 0.0
        %368 = vmatpush.msra.mxu0 0.0
        %369 = vmatpush.msra.mxu0 0.0
        %370 = vmatpush.msra.mxu0 0.0
        %371 = vmatpush.msra.mxu0 0.0
        %372 = vmatpush.msra.mxu0 %v332
        %373 = vmatpush.msra.mxu0 %v330
        %374 = vmatmul.f32.gmra.mxu0 %v336
        %v375 = vpop.f32.mrf.mxu0
        %v376 = vadd.f32 0.0, %v375
        %377 = vdwg.mxu0
        %v378 = vld [vmem:[%s2] sm:$0x1]
        %v380 = vperm.slane %v378, 0
        %v382 = vadd.f32 %v356, %v380
        %v383 = vmax.f32 %v382, 0.0
        %v384 = vld [vmem:[#allocation7] sm:$0xff]
        %v385 = vld [vmem:[#allocation7 + $0x8] sm:$0xff]
        %v386 = vld [vmem:[#allocation7 + $0x10] sm:$0xff]
        %v387 = vld [vmem:[#allocation7 + $0x18] sm:$0xff]
        %v388 = vld [vmem:[#allocation7 + $0x20] sm:$0xff]
        %v389 = vld [vmem:[#allocation7 + $0x28] sm:$0xff]
        %v390 = vld [vmem:[#allocation7 + $0x30] sm:$0xff]
        %v391 = vld [vmem:[#allocation7 + $0x38] sm:$0xff]
        %v392 = vld [vmem:[#allocation7 + $0x40] sm:$0xff]
        %v393 = vld [vmem:[#allocation7 + $0x48] sm:$0xff]
        %v394 = vld [vmem:[#allocation7 + $0x50] sm:$0xff]
        %v395 = vld [vmem:[#allocation7 + $0x58] sm:$0xff]
        %v396 = vld [vmem:[#allocation7 + $0x60] sm:$0xff]
        %v397 = vld [vmem:[#allocation7 + $0x68] sm:$0xff]
        %v398 = vld [vmem:[#allocation7 + $0x70] sm:$0xff]
        %v399 = vld [vmem:[#allocation7 + $0x78] sm:$0xff]
        %400 = vmatpush.msra.mxu0 %v399
        %401 = vmatpush.msra.mxu0 %v398
        %402 = vmatpush.msra.mxu0 %v397
        %403 = vmatpush.msra.mxu0 %v396
        %404 = vmatpush.msra.mxu0 %v395
        %405 = vmatpush.msra.mxu0 %v394
        %406 = vmatpush.msra.mxu0 %v393
        %407 = vmatpush.msra.mxu0 %v392
        %408 = vmatpush.msra.mxu0 %v391
        %409 = vmatpush.msra.mxu0 %v390
        %410 = vmatpush.msra.mxu0 %v389
        %411 = vmatpush.msra.mxu0 %v388
        %412 = vmatpush.msra.mxu0 %v387
        %413 = vmatpush.msra.mxu0 %v386
        %414 = vmatpush.msra.mxu0 %v385
        %415 = vmatpush.msra.mxu0 %v384
        %416 = vmatmul.f32.gmra.mxu0 %v383
        %v417 = vpop.f32.mrf.mxu0
        %v418 = vadd.f32 %v376, %v417
        %419 = vdwg.mxu0
        %v420 = vld [vmem:[%s4] sm:$0x1]
        %v422 = vperm.slane %v420, 0
        %v424 = vadd.f32 %v418, %v422
        %425 = vadd.xlane.f32.xlu0 %v424
        %v426 = vpop.xlane.xlu0 %425
        %v427 = vmul.f32 %v426, 0.0625
        %v428 = vmul.f32 %v424, %v424
        %429 = vadd.xlane.f32.xlu0 %v428
        %v430 = vpop.xlane.xlu0 %429
        %v431 = vmul.f32 %v430, 0.0625
        %v432 = vmul.f32 %v427, %v427
        %v433 = vsub.f32 %v431, %v432
        %v434 = vsub.f32 %v424, %v427
        %v435 = vadd.f32 %v433, 1e-05
        %v436 = vrsqrt.pop %v435
        %v437 = vmul.f32 %v436, %v435
        %v438 = vmul.f32 %v437, %v436
        %v439 = vmul.f32 0.5, %v438
        %v440 = vsub.f32 1.5, %v439
        %v441 = vmul.f32 %v436, %v440
        %vm442 = vweird.f32 %v435
        %vm443 = vweird.f32 %v436
        %vm444 = vmor %vm442, %vm443
        %v445 = vsel %vm444, %v436, %v441
        %v446 = vmul.f32 %v434, %v445
        %v447 = vld [vmem:[%s5] sm:$0x1]
        %v449 = vperm.slane %v447, 0
        %v451 = vmul.f32 %v446, %v449
        %v452 = vld [vmem:[%s6] sm:$0x1]
        %v454 = vperm.slane %v452, 0
        %v456 = vadd.f32 %v451, %v454
        %457 = vst [vmem:[%s328] sm:$0xff] %v456
        %s458 = sand.u32 %s185, 1
        %s459 = scalar_lea.sflag [#allocation4], %s458
        %s460 = sand.u32 %s185, 1
        %s461 = smul.addr %s460, 8
        %s462 = scalar_lea.vmem [#allocation8], %s461
        // Predicated region
        $region61: #{tpu_custom_call.1} parent=47 // pred_check
          %p463 = pneg %p195
        $region62: #{tpu_custom_call.1} parent=47 // pred_check_branch
          %465 = sbr.rel (%p463) target = $region64
        $region63: #{tpu_custom_call.1} parent=47 // pred_region
          %467 = vsyncadd %s459, 0
          %s468 = smul.addr %s25, 8
          %s469 = scalar_lea.hbm %s7, %s468
          %s471 = sshll.u32 %s462, 4
          %s472 = int_to_ptr.vmem [resolvable:$true] %s471
          %s473 = sshll.u32 %s469, 4
          %s474 = int_to_ptr.hbm [resolvable:$true] %s473
          %476 = dma.vmem_to_hbm [thread:$0]  %s472, 128, %s474, %s459
        $region64: #{tpu_custom_call.1} parent=47 // pred_fallthru
          _
      $region48: #{tpu_custom_call.1} parent=5 // pred_fallthru
        _
      %p477 = scmp.le.s32.totalorder 2, %s20
      // Predicated region
      $region65: #{tpu_custom_call.1} parent=5 // pred_check
        %p478 = pneg %p477
      $region66: #{tpu_custom_call.1} parent=5 // pred_check_branch
        %480 = sbr.rel (%p478) target = $region68
      $region67: #{tpu_custom_call.1} parent=5 // pred_region
        %s481 = ssub.s32 %s20, 2
        // Predicated region
        $region69: #{tpu_custom_call.1} parent=67 // pred_check
          %p482 = pneg %p201
        $region70: #{tpu_custom_call.1} parent=67 // pred_check_branch
          %484 = sbr.rel (%p482) target = $region72
        $region71: #{tpu_custom_call.1} parent=67 // pred_region
          %s485 = sand.u32 %s186, 1
          %s486 = scalar_lea.sflag [#allocation4], %s485
          %s487 = sand.u32 %s186, 1
          %s488 = smul.addr %s487, 8
          %s489 = scalar_lea.vmem [#allocation8], %s488
          %491 = dma.done %s486, 128
        $region72: #{tpu_custom_call.1} parent=67 // pred_fallthru
          _
      $region68: #{tpu_custom_call.1} parent=5 // pred_fallthru
        _
    $region6: #{tpu_custom_call.1} parent=1 // loop_footer
      %s24 = sadd.s32 1, %s20
    $region7: #{tpu_custom_call.1} parent=1 // loop_footer_branch
      %19 = sbr.rel target = $region3
    $region8: #{tpu_custom_call.1} parent=1 // loop_exit
      _
    %492 = vsyncpa [#allocation3], 1
    %s493 = scalar_lea.sflag [#allocation3], 1
    %494 = vsyncpa %s493, 1
    %495 = vsyncpa [#allocation6], 1
    %496 = vsyncpa [#allocation4], 1
    %s497 = scalar_lea.sflag [#allocation4], 1
    %498 = vsyncpa %s497, 1

</llo_original>
